<compile_context>
chip_gen: v6e
topology: v6e:2x2x1
jax: 0.10.0
libtpu: 0.0.40
codegen_flags: <defaults>
</compile_context>

<pallas_src>
import functools
import math

import jax
import jax.numpy as jnp
from jax.experimental import pallas as pl
from jax.experimental.pallas import tpu as pltpu

_VMEM_LIMIT_BYTES = 32 * 1024 * 1024  # safe on v5e/v6e/v7x; >> our ~6 MiB tile budget


def _round_up(x, m):
    return ((x + m - 1) // m) * m


def _apply_activation(y, name):
    if name == "identity":
        return y
    if name == "relu":
        return jnp.maximum(y, 0.0)
    if name == "silu":
        return y * jax.nn.sigmoid(y)
    if name == "sigmoid":
        return jax.nn.sigmoid(y)
    if name == "tanh":
        return jnp.tanh(y)
    if name == "gelu":
        # PyTorch nn.GELU defaults to the exact erf form (parity path).
        return jax.nn.gelu(y, approximate=False)
    if name == "gelu_tanh":
        # Opt-in fast path: tanh form rides the (otherwise idle) EUP slot.
        return jax.nn.gelu(y, approximate=True)
    raise ValueError(f"unknown activation {name}")


def _epilogue(y, b_ref, par_ref, activation, use_par):
    """bias add + (optional) activation_par scale + activation, all in f32."""
    y = y + b_ref[...].astype(jnp.float32)
    if activation != "identity":
        if use_par:
            y = par_ref[0] * y
        y = _apply_activation(y, activation)
    return y


# ---------------------------------------------------------------------------
# Kernel variants
# ---------------------------------------------------------------------------

def _fc_kernel_single_k(par_ref, x_ref, w_ref, b_ref, o_ref, *, activation, use_par):
    """K fits one tile: no accumulator, no zero fill, single MXU shot + epilogue."""
    y = jnp.dot(x_ref[...], w_ref[...], preferred_element_type=jnp.float32)
    y = _epilogue(y, b_ref, par_ref, activation, use_par)
    o_ref[...] = y.astype(o_ref.dtype)


def _fc_kernel_acc_in_out(par_ref, x_ref, w_ref, b_ref, o_ref, *, activation, use_par):
    """f32 output: accumulate straight into the VMEM-resident output block."""
    k = pl.program_id(2)

    @pl.when(k == 0)
    def _():
        o_ref[...] = jnp.zeros_like(o_ref)

    o_ref[...] += jnp.dot(x_ref[...], w_ref[...], preferred_element_type=jnp.float32)

    @pl.when(k == pl.num_programs(2) - 1)
    def _():
        o_ref[...] = _epilogue(o_ref[...], b_ref, par_ref,
                               activation, use_par).astype(o_ref.dtype)


def _fc_kernel_scratch(par_ref, x_ref, w_ref, b_ref, o_ref, acc_ref, *,
                       activation, use_par):
    """Narrow output dtype: keep a f32 VMEM accumulator, cast on finalize."""
    k = pl.program_id(2)

    @pl.when(k == 0)
    def _():
        acc_ref[...] = jnp.zeros_like(acc_ref)

    acc_ref[...] += jnp.dot(x_ref[...], w_ref[...], preferred_element_type=jnp.float32)

    @pl.when(k == pl.num_programs(2) - 1)
    def _():
        y = _epilogue(acc_ref[...], b_ref, par_ref, activation, use_par)
        o_ref[...] = y.astype(o_ref.dtype)


# ---------------------------------------------------------------------------
# Parameter packing (one-time HBM work: transpose, pad, cast)
# ---------------------------------------------------------------------------

def pack_fc_params(weight_t, bias, *, activation="identity", activation_par=None,
                   compute_dtype=jnp.bfloat16, tn=512, tk=512):
    """weight_t: [in_f, out_f] (contraction on axis 0); bias: [out_f].
    Pads/cast ONCE so the per-call wrapper never touches the weight again."""
    in_f, out_f = weight_t.shape
    assert bias.shape == (out_f,)

    tn = min(tn, _round_up(out_f, 128))
    tk = min(tk, _round_up(in_f, 128))
    Kp, Np = _round_up(in_f, tk), _round_up(out_f, tn)

    wp = weight_t
    if (Kp, Np) != (in_f, out_f):
        wp = jnp.pad(wp, ((0, Kp - in_f), (0, Np - out_f)))
    if compute_dtype is not None:
        wp = wp.astype(compute_dtype)
    bp = (bias if Np == out_f else jnp.pad(bias, (0, Np - out_f)))
    bp = bp.astype(jnp.float32).reshape(1, Np)

    use_par = activation_par is not None
    par = jnp.asarray(activation_par if use_par else 1.0,
                      dtype=jnp.float32).reshape(1)

    return dict(weight_t=wp, bias=bp, par=par, use_par=use_par,
                activation=activation, in_features=in_f, out_features=out_f,
                tn=tn, tk=tk, compute_dtype=compute_dtype)


def init_fc_params(key, in_features, out_features, *, activation="identity",
                   activation_par=None, compute_dtype=jnp.bfloat16, tn=512, tk=512):
    """Matches FCLayer.reset_parameters (xavier_uniform_ weight, zero bias)."""
    bound = math.sqrt(6.0 / (in_features + out_features))
    w_t = jax.random.uniform(key, (in_features, out_features), dtype=jnp.float32,
                             minval=-bound, maxval=bound)
    b = jnp.zeros((out_features,), dtype=jnp.float32)
    return pack_fc_params(w_t, b, activation=activation, activation_par=activation_par,
                          compute_dtype=compute_dtype, tn=tn, tk=tk)


# ---------------------------------------------------------------------------
# Forward wrapper
# ---------------------------------------------------------------------------

def fc_layer(params, x, *, tm=512, out_dtype=None):
    """x: [B, in_features] -> [B, out_features]."""
    B, in_f = x.shape
    assert in_f == params["in_features"]
    out_f = params["out_features"]
    wp, bp, par = params["weight_t"], params["bias"], params["par"]
    Kp, Np = wp.shape
    tn, tk = params["tn"], params["tk"]
    out_dtype = jnp.dtype(out_dtype or x.dtype)

    # M tile: as large as the batch allows (raises flop/byte on the streamed weight).
    tm = min(tm, _round_up(B, 8))
    Mp = _round_up(B, tm)

    # v7x megacore: if the (M, N) grid would be a single tile, split N so both
    # TensorCores get a parallel block (tn stays a multiple of 128, dividing Np).
    if Mp // tm == 1 and Np // tn == 1:
        cand = (Np // 2) // 128 * 128
        while cand >= 128:
            if Np % cand == 0:
                tn = cand
                break
            cand -= 128

    # Only x is padded/cast per call (small vs the weight).
    xp = x
    if (Mp, Kp) != (B, in_f):
        xp = jnp.pad(xp, ((0, Mp - B), (0, Kp - in_f)))
    if params["compute_dtype"] is not None:
        xp = xp.astype(params["compute_dtype"])

    nM, nN, nK = Mp // tm, Np // tn, Kp // tk
    activation = params["activation"]
    use_par = params["use_par"]

    # Cost estimate with re-streaming accounted for (advisory for XLA scheduling).
    trans = 1 if activation in ("silu", "sigmoid", "tanh", "gelu", "gelu_tanh") else 0
    cost = pl.CostEstimate(
        flops=int(2 * Mp * Kp * Np),
        transcendentals=int(trans * Mp * Np),
        bytes_accessed=int(nM * Kp * Np * wp.dtype.itemsize        # W re-streamed per M tile
                           + nN * Mp * Kp * xp.dtype.itemsize      # x re-streamed per N tile
                           + nM * Np * bp.dtype.itemsize
                           + Mp * Np * out_dtype.itemsize),
    )

    kern_kwargs = dict(activation=activation, use_par=use_par)
    compiler_params_3d = pltpu.CompilerParams(
        dimension_semantics=("parallel", "parallel", "arbitrary"),
        vmem_limit_bytes=_VMEM_LIMIT_BYTES)

    if nK == 1:
        kernel = functools.partial(_fc_kernel_single_k, **kern_kwargs)
        grid = (nM, nN)
        in_specs = [
            pl.BlockSpec(memory_space=pltpu.MemorySpace.SMEM),        # activation_par
            pl.BlockSpec((tm, Kp), lambda i, j: (i, 0)),              # x tile
            pl.BlockSpec((Kp, tn), lambda i, j: (0, j)),              # W^T tile
            pl.BlockSpec((1, tn), lambda i, j: (0, j)),               # bias
        ]
        out_specs = pl.BlockSpec((tm, tn), lambda i, j: (i, j))
        scratch = []
        compiler_params = pltpu.CompilerParams(
            dimension_semantics=("parallel", "parallel"),
            vmem_limit_bytes=_VMEM_LIMIT_BYTES)
    else:
        in_specs = [
            pl.BlockSpec(memory_space=pltpu.MemorySpace.SMEM),        # activation_par
            pl.BlockSpec((tm, tk), lambda i, j, k: (i, k)),           # x tile
            pl.BlockSpec((tk, tn), lambda i, j, k: (k, j)),           # W^T tile
            pl.BlockSpec((1, tn), lambda i, j, k: (0, j)),            # bias (K-resident)
        ]
        out_specs = pl.BlockSpec((tm, tn), lambda i, j, k: (i, j))
        grid = (nM, nN, nK)
        compiler_params = compiler_params_3d
        if out_dtype == jnp.dtype(jnp.float32):
            # Accumulate directly into the VMEM-resident output block.
            kernel = functools.partial(_fc_kernel_acc_in_out, **kern_kwargs)
            scratch = []
        else:
            kernel = functools.partial(_fc_kernel_scratch, **kern_kwargs)
            scratch = [pltpu.VMEM((tm, tn), jnp.float32)]

    out = pl.pallas_call(
        kernel,
        out_shape=jax.ShapeDtypeStruct((Mp, Np), out_dtype),
        grid_spec=pltpu.PrefetchScalarGridSpec(
            num_scalar_prefetch=0,
            grid=grid,
            in_specs=in_specs,
            out_specs=out_specs,
            scratch_shapes=scratch,
        ),
        compiler_params=compiler_params,
        cost_estimate=cost,
    )(par, xp, wp, bp)

    if (Mp, Np) != (B, out_f):
        out = out[:B, :out_f]
    return out


# ---------------------------------------------------------------------------
# Self-test
# ---------------------------------------------------------------------------

if __name__ == "__main__":
    key = jax.random.PRNGKey(0)
    kx, kw, kx3, kw3 = jax.random.split(key, 4)

    # 1) Default config (Activation.IDENTITY), f32 compute path for tight parity.
    B, in_f, out_f = 8, 32, 32
    x = jax.random.normal(kx, (B, in_f), dtype=jnp.float32)
    p_id = init_fc_params(kw, in_f, out_f, activation="identity",
                          compute_dtype=jnp.float32)
    y_id = fc_layer(p_id, x)
    jax.block_until_ready(y_id)
    w_full = p_id["weight_t"][:in_f, :out_f].astype(jnp.float32)
    b_full = p_id["bias"][0, :out_f]
    ref_id = jnp.dot(x, w_full, precision=jax.lax.Precision.HIGHEST) + b_full
    assert y_id.shape == (B, out_f)
    assert jnp.allclose(y_id, ref_id, atol=1e-4, rtol=1e-4)

    # 2) Activation with a learnable activation_par (SiLU), same weights.
    p_silu = init_fc_params(kw, in_f, out_f, activation="silu",
                            activation_par=0.7, compute_dtype=jnp.float32)
    y_silu = fc_layer(p_silu, x)
    jax.block_until_ready(y_silu)
    z = jnp.float32(0.7) * ref_id
    ref_silu = z * jax.nn.sigmoid(z)
    assert jnp.allclose(y_silu, ref_silu, atol=1e-4, rtol=1e-4)

    # 3) Multi-tile K reduction (grid 2x2x2) at small shapes; bf16 MXU inputs,
    #    f32 output accumulated directly in the output block (no scratch).
    B3, in3, out3 = 32, 256, 256
    x3 = jax.random.normal(kx3, (B3, in3), dtype=jnp.float32)
    p3 = init_fc_params(kw3, in3, out3, activation="relu",
                        compute_dtype=jnp.bfloat16, tn=128, tk=128)
    y3 = fc_layer(p3, x3, tm=16)
    jax.block_until_ready(y3)
    w3 = p3["weight_t"][:in3, :out3].astype(jnp.float32)
    b3 = p3["bias"][0, :out3]
    x3c = x3.astype(jnp.bfloat16).astype(jnp.float32)
    ref3 = jnp.maximum(
        jnp.dot(x3c, w3, precision=jax.lax.Precision.HIGHEST) + b3, 0.0)
    assert jnp.allclose(y3, ref3, atol=2e-3, rtol=2e-3)

    # 4) Narrow output dtype (bf16) -> scratch-accumulator variant.
    y4 = fc_layer(p3, x3, tm=16, out_dtype=jnp.bfloat16)
    jax.block_until_ready(y4)
    assert y4.dtype == jnp.bfloat16
    assert jnp.allclose(y4.astype(jnp.float32), ref3, atol=5e-2, rtol=5e-2)

    print("KERNEL_OK")
</pallas_src>

<mosaic_0001>
module attributes {stable_mosaic.version = 11 : i64} {
  func.func @_fc_kernel_single_k(%arg0: i32, %arg1: i32, %arg2: memref<1xf32, #tpu.memory_space<smem>>, %arg3: memref<8x128xf32, #tpu.memory_space<vmem>>, %arg4: memref<128x128xf32, #tpu.memory_space<vmem>>, %arg5: memref<1x128xf32, #tpu.memory_space<vmem>>, %arg6: memref<8x128xf32, #tpu.memory_space<vmem>>) attributes {dimension_semantics = [#tpu.dimension_semantics<parallel>, #tpu.dimension_semantics<parallel>], iteration_bounds = array<i64: 1, 1>, scalar_prefetch = 0 : i64, scratch_operands = 0 : i64, tpu.core_type = #tpu.core_type<tc>, window_params = [{transform_indices = @transform_0, window_bounds = array<i64: 1>}, {transform_indices = @transform_1, window_bounds = array<i64: 8, 128>}, {transform_indices = @transform_2, window_bounds = array<i64: 128, 128>}, {transform_indices = @transform_3, window_bounds = array<i64: 1, 128>}, {transform_indices = @transform_4, window_bounds = array<i64: 8, 128>}]} {
    %c0 = arith.constant 0 : index
    %c0_0 = arith.constant 0 : index
    %0 = vector.load %arg3[%c0, %c0_0] : memref<8x128xf32, #tpu.memory_space<vmem>>, vector<8x128xf32>
    %c0_1 = arith.constant 0 : index
    %c0_2 = arith.constant 0 : index
    %1 = vector.load %arg4[%c0_1, %c0_2] : memref<128x128xf32, #tpu.memory_space<vmem>>, vector<128x128xf32>
    %cst = arith.constant dense<0.000000e+00> : vector<8x128xf32>
    %2 = tpu.matmul %0, %1, %cst {dimension_numbers = #tpu.dot_dimension_numbers<[1], [0], [0], [1], [0, 0, 1, 1], [], []>} : vector<8x128xf32>, vector<128x128xf32>, vector<8x128xf32> -> vector<8x128xf32>
    %c0_3 = arith.constant 0 : index
    %c0_4 = arith.constant 0 : index
    %3 = vector.load %arg5[%c0_3, %c0_4] : memref<1x128xf32, #tpu.memory_space<vmem>>, vector<1x128xf32>
    %4 = vector.broadcast %3 : vector<1x128xf32> to vector<8x128xf32>
    %5 = arith.addf %2, %4 : vector<8x128xf32>
    %c0_5 = arith.constant 0 : index
    %c0_6 = arith.constant 0 : index
    %6 = vector.load %arg6[%c0_5, %c0_6] : memref<8x128xf32, #tpu.memory_space<vmem>>, vector<8x128xf32>
    tpu.vector_store %arg6[%c0_5, %c0_6], %5 {strides = array<i32>} : memref<8x128xf32, #tpu.memory_space<vmem>>, vector<8x128xf32>,
    return
  }
  func.func @transform_0(%arg0: i32, %arg1: i32) -> i32 {
    %c0_i32 = arith.constant 0 : i32
    %c0_i32_0 = arith.constant 0 : i32
    return %c0_i32 : i32
  }
  func.func @transform_1(%arg0: i32, %arg1: i32) -> (i32, i32) {
    %c0_i32 = arith.constant 0 : i32
    %c0_i32_0 = arith.constant 0 : i32
    return %arg0, %c0_i32 : i32, i32
  }
  func.func @transform_2(%arg0: i32, %arg1: i32) -> (i32, i32) {
    %c0_i32 = arith.constant 0 : i32
    %c0_i32_0 = arith.constant 0 : i32
    return %c0_i32, %arg1 : i32, i32
  }
  func.func @transform_3(%arg0: i32, %arg1: i32) -> (i32, i32) {
    %c0_i32 = arith.constant 0 : i32
    %c0_i32_0 = arith.constant 0 : i32
    return %c0_i32, %arg1 : i32, i32
  }
  func.func @transform_4(%arg0: i32, %arg1: i32) -> (i32, i32) {
    %c0_i32 = arith.constant 0 : i32
    return %arg0, %arg1 : i32, i32
  }
}

</mosaic_0001>

<llo_original>
// kernel: tpu_custom_call.1
$region0: #{tpu_custom_call.1}
  #allocation0 [shape = 'u32[]', space=smem, size = 0x4, offset = 0x4, fixed_abs, tag = 'smem constant byte address 0x4 - core index']
  #allocation1 [shape = 'u32[144,128]{1,0:T(1,128)}', space=vmem, size = 0x12000, scoped, tag = 'internal scratch']
  #allocation2 [shape = 'f32[1]{0:T(128)S(6)}', space=smem, size = 0x200, scoped, tag = 'scoped memory for tpu_custom_call.1']
  %s0 = inlined_call_operand.<no memory space> [shape: f32[1], index: 0, kind: input, shape index: {}]
  %s1 = inlined_call_operand.hbm [shape: f32[8,128], index: 1, kind: input, shape index: {}]
  %s2 = inlined_call_operand.hbm [shape: f32[128,128], index: 2, kind: input, shape index: {}]
  %s3 = inlined_call_operand.vmem [shape: f32[1,128], index: 3, kind: input, shape index: {}]
  %s4 = inlined_call_operand.hbm [shape: f32[8,128], index: 4, kind: output, shape index: {}]
  %s5 = sld [smem:[#allocation0]]
  $region34: #{tpu_custom_call.1} parent=0
    _
  %s7 = ssub.s32 1, %s5
  %s8 = scalar_select 0, %s7, %s5
  %9 = sst [smem:[#allocation2]] %s0
  $region1: #{tpu_custom_call.1} parent=0
    #allocation3 [shape = 'u8[4096]{0}', space=vmem, size = 0x1000, scoped, tag = 'input window, operand 1, single buffered']
    #allocation4 [shape = 's32[1]{0}', space=sflag, size = 0x4, scoped, tag = 'scoped memory for tpu_custom_call.1']
    #allocation5 [shape = 's32[1]{0}', space=sflag, size = 0x4, scoped, tag = 'scoped memory for tpu_custom_call.1']
    #allocation6 [shape = 'u8[65536]{0}', space=vmem, size = 0x10000, scoped, tag = 'input window, operand 2, single buffered']
    #allocation7 [shape = 's32[1]{0}', space=sflag, size = 0x4, scoped, tag = 'scoped memory for tpu_custom_call.1']
    #allocation8 [shape = 'u8[4096]{0}', space=vmem, size = 0x1000, scoped, tag = 'output window, operand 0, single buffered']
    %10 = vsyncpa [#allocation4], 0
    %11 = vsyncpa [#allocation7], 0
    %12 = vsyncpa [#allocation5], 0
    // Predicated region
    $region2: #{tpu_custom_call.1} parent=1 // pred_check
      _
    $region3: #{tpu_custom_call.1} parent=1 // pred_check_branch
      %14 = sbr.rel (0) target = $region5
    $region4: #{tpu_custom_call.1} parent=1 // pred_region
      _
    $region5: #{tpu_custom_call.1} parent=1 // pred_fallthru
      _
    // Predicated region
    $region6: #{tpu_custom_call.1} parent=1 // pred_check
      _
    $region7: #{tpu_custom_call.1} parent=1 // pred_check_branch
      %16 = sbr.rel (0) target = $region9
    $region8: #{tpu_custom_call.1} parent=1 // pred_region
      %s18 = ssub.s32 128, 128
      %19 = vsyncadd [#allocation4], %s18
      %s21 = sshll.u32 [#allocation3], 4
      %s22 = int_to_ptr.vmem [resolvable:$true] %s21
      %24 = dma.hbm_to_vmem [thread:$0]  %s1, 128, %s22, [#allocation4]
    $region9: #{tpu_custom_call.1} parent=1 // pred_fallthru
      _
    // Predicated region
    $region10: #{tpu_custom_call.1} parent=1 // pred_check
      _
    $region11: #{tpu_custom_call.1} parent=1 // pred_check_branch
      %26 = sbr.rel (0) target = $region13
    $region12: #{tpu_custom_call.1} parent=1 // pred_region
      %s28 = ssub.s32 2048, 2048
      %29 = vsyncadd [#allocation7], %s28
      %s30 = sshll.u32 [#allocation6], 4
      %s31 = int_to_ptr.vmem [resolvable:$true] %s30
      %36 = dma.hbm_to_vmem [thread:$0]  %s2, 2048, %s31, [#allocation7], 128, 128, 8
    $region13: #{tpu_custom_call.1} parent=1 // pred_fallthru
      _
    // Predicated region
    $region14: #{tpu_custom_call.1} parent=1 // pred_check
      _
    $region15: #{tpu_custom_call.1} parent=1 // pred_check_branch
      %38 = sbr.rel (0) target = $region17
    $region16: #{tpu_custom_call.1} parent=1 // pred_region
      _
    $region17: #{tpu_custom_call.1} parent=1 // pred_fallthru
      _
    // Predicated region
    $region18: #{tpu_custom_call.1} parent=1 // pred_check
      _
    $region19: #{tpu_custom_call.1} parent=1 // pred_check_branch
      %40 = sbr.rel (0) target = $region21
    $region20: #{tpu_custom_call.1} parent=1 // pred_region
      %41 = dma.done [#allocation4], 128
    $region21: #{tpu_custom_call.1} parent=1 // pred_fallthru
      _
    // Predicated region
    $region22: #{tpu_custom_call.1} parent=1 // pred_check
      _
    $region23: #{tpu_custom_call.1} parent=1 // pred_check_branch
      %43 = sbr.rel (0) target = $region25
    $region24: #{tpu_custom_call.1} parent=1 // pred_region
      %44 = dma.done [#allocation7], 2048
    $region25: #{tpu_custom_call.1} parent=1 // pred_fallthru
      _
    %v45 = vld [vmem:[#allocation3] sm:$0xff]
    %v46 = vld [vmem:[#allocation6] sm:$0xff]
    %v47 = vld [vmem:[#allocation6 + $0x8] sm:$0xff]
    %v48 = vld [vmem:[#allocation6 + $0x10] sm:$0xff]
    %v49 = vld [vmem:[#allocation6 + $0x18] sm:$0xff]
    %v50 = vld [vmem:[#allocation6 + $0x20] sm:$0xff]
    %v51 = vld [vmem:[#allocation6 + $0x28] sm:$0xff]
    %v52 = vld [vmem:[#allocation6 + $0x30] sm:$0xff]
    %v53 = vld [vmem:[#allocation6 + $0x38] sm:$0xff]
    %v54 = vld [vmem:[#allocation6 + $0x40] sm:$0xff]
    %v55 = vld [vmem:[#allocation6 + $0x48] sm:$0xff]
    %v56 = vld [vmem:[#allocation6 + $0x50] sm:$0xff]
    %v57 = vld [vmem:[#allocation6 + $0x58] sm:$0xff]
    %v58 = vld [vmem:[#allocation6 + $0x60] sm:$0xff]
    %v59 = vld [vmem:[#allocation6 + $0x68] sm:$0xff]
    %v60 = vld [vmem:[#allocation6 + $0x70] sm:$0xff]
    %v61 = vld [vmem:[#allocation6 + $0x78] sm:$0xff]
    %v62 = vld [vmem:[%s3] sm:$0x1]
    %v64 = vlaneseq
    %v65 = vshrl.u32 %v64, 7
    %v66 = vsub.s32 0, %v65
    %v67 = vrot.slane %v62, %v66
    %69 = vmatprep.subr.mxu0 0.0
    %70 = vmatpush1.msra.mxu0 %v61
    %71 = vmatprep.subr.mxu0 0.0
    %72 = vmatpush1.msra.mxu0 %v60
    %73 = vmatprep.subr.mxu0 0.0
    %74 = vmatpush1.msra.mxu0 %v59
    %75 = vmatprep.subr.mxu0 0.0
    %76 = vmatpush1.msra.mxu0 %v58
    %77 = vmatprep.subr.mxu0 0.0
    %78 = vmatpush1.msra.mxu0 %v57
    %79 = vmatprep.subr.mxu0 0.0
    %80 = vmatpush1.msra.mxu0 %v56
    %81 = vmatprep.subr.mxu0 0.0
    %82 = vmatpush1.msra.mxu0 %v55
    %83 = vmatprep.subr.mxu0 0.0
    %84 = vmatpush1.msra.mxu0 %v54
    %85 = vmatprep.subr.mxu0 0.0
    %86 = vmatpush1.msra.mxu0 %v53
    %87 = vmatprep.subr.mxu0 0.0
    %88 = vmatpush1.msra.mxu0 %v52
    %89 = vmatprep.subr.mxu0 0.0
    %90 = vmatpush1.msra.mxu0 %v51
    %91 = vmatprep.subr.mxu0 0.0
    %92 = vmatpush1.msra.mxu0 %v50
    %93 = vmatprep.subr.mxu0 0.0
    %94 = vmatpush1.msra.mxu0 %v49
    %95 = vmatprep.subr.mxu0 0.0
    %96 = vmatpush1.msra.mxu0 %v48
    %97 = vmatprep.subr.mxu0 0.0
    %98 = vmatpush1.msra.mxu0 %v47
    %99 = vmatprep.subr.mxu0 0.0
    %100 = vmatpush1.msra.mxu0 %v46
    %101 = vmatprep.subr.mxu0 0.0
    %102 = vmatpush2.msra.mxu0 0.0
    %103 = vmatprep.subr.mxu0 0.0
    %104 = vmatpush2.msra.mxu0 0.0
    %105 = vmatprep.subr.mxu0 0.0
    %106 = vmatpush2.msra.mxu0 0.0
    %107 = vmatprep.subr.mxu0 0.0
    %108 = vmatpush2.msra.mxu0 0.0
    %109 = vmatprep.subr.mxu0 0.0
    %110 = vmatpush2.msra.mxu0 0.0
    %111 = vmatprep.subr.mxu0 0.0
    %112 = vmatpush2.msra.mxu0 0.0
    %113 = vmatprep.subr.mxu0 0.0
    %114 = vmatpush2.msra.mxu0 0.0
    %115 = vmatprep.subr.mxu0 0.0
    %116 = vmatpush2.msra.mxu0 0.0
    %117 = vmatprep.subr.mxu0 0.0
    %118 = vmatpush2.msra.mxu0 0.0
    %119 = vmatprep.subr.mxu0 0.0
    %120 = vmatpush2.msra.mxu0 0.0
    %121 = vmatprep.subr.mxu0 0.0
    %122 = vmatpush2.msra.mxu0 0.0
    %123 = vmatprep.subr.mxu0 0.0
    %124 = vmatpush2.msra.mxu0 0.0
    %125 = vmatprep.subr.mxu0 0.0
    %126 = vmatpush2.msra.mxu0 0.0
    %127 = vmatprep.subr.mxu0 0.0
    %128 = vmatpush2.msra.mxu0 0.0
    %129 = vmatprep.subr.mxu0 0.0
    %130 = vmatpush2.msra.mxu0 0.0
    %131 = vmatprep.subr.mxu0 0.0
    %132 = vmatpush2.msra.mxu0 0.0
    %133 = vmatprep.mubr.f32.mxu0 0.0
    %134 = vmatmul.mubr.f32.gmra.mxu0 %v45
    %v135 = vpop.f32.mrf.mxu0
    %v136 = vadd.f32 %v67, %v135
    %v137 = vpop.f32.mrf.mxu0
    %138 = vdwg.mxu0
    %139 = vst [vmem:[#allocation8] sm:$0xff] %v136
    // Predicated region
    $region26: #{tpu_custom_call.1} parent=1 // pred_check
      _
    $region27: #{tpu_custom_call.1} parent=1 // pred_check_branch
      %141 = sbr.rel (0) target = $region29
    $region28: #{tpu_custom_call.1} parent=1 // pred_region
      %s143 = ssub.s32 128, 128
      %144 = vsyncadd [#allocation5], %s143
      %s146 = sshll.u32 [#allocation8], 4
      %s147 = int_to_ptr.vmem [resolvable:$true] %s146
      %149 = dma.vmem_to_hbm [thread:$0]  %s147, 128, %s4, [#allocation5]
    $region29: #{tpu_custom_call.1} parent=1 // pred_fallthru
      _
    // Predicated region
    $region30: #{tpu_custom_call.1} parent=1 // pred_check
      _
    $region31: #{tpu_custom_call.1} parent=1 // pred_check_branch
      %151 = sbr.rel (0) target = $region33
    $region32: #{tpu_custom_call.1} parent=1 // pred_region
      %152 = dma.done [#allocation5], 128
    $region33: #{tpu_custom_call.1} parent=1 // pred_fallthru
      _
    %153 = vsyncpa [#allocation4], 1
    %154 = vsyncpa [#allocation7], 1
    %155 = vsyncpa [#allocation5], 1

</llo_original>
